<compile_context>
chip_gen: v6e
topology: v6e:2x2x1
jax: 0.10.0
libtpu: 0.0.40
codegen_flags: <defaults>
</compile_context>

<pallas_src>
import functools

import jax
import jax.numpy as jnp
from jax import lax
from jax.experimental import pallas as pl
from jax.experimental.pallas import tpu as pltpu

NEG_SLOPE = 0.01   # F.leaky_relu default
BN_EPS = 1e-5      # nn.BatchNorm2d default
LANE = 128         # TPU lane width (same on v5e/v6e/v7x)


def _round_up(x, m):
    return (x + m - 1) // m * m


# -------- pass 1 (BN only): conv matmul -> per-tile per-channel BN moments --------
def stats_kernel(p_ref, w_ref, stats_ref, *, p_valid, tile_p):
    """p_ref:(TILE_P,KPAD) bf16  w_ref:(KPAD,CPAD) bf16
       stats_ref:(8,CPAD) f32 (row0 = sum, row1 = sum-of-squares, rows 2..7 zero)."""
    i = pl.program_id(0)
    # bf16 x bf16 -> f32 accumulation: full-rate MXU. Result never leaves registers.
    y = jnp.dot(p_ref[...], w_ref[...], preferred_element_type=jnp.float32)
    # Mask rows past the valid pixel count so padding does not pollute batch stats.
    row = i * tile_p + lax.broadcasted_iota(jnp.int32, y.shape, 0)
    ym = jnp.where(row < p_valid, y, 0.0)
    s = jnp.sum(ym, axis=0, keepdims=True)          # (1, CPAD) sublane reduce (XLU)
    ss = jnp.sum(ym * ym, axis=0, keepdims=True)    # (1, CPAD)
    ridx = lax.broadcasted_iota(jnp.int32, stats_ref.shape, 0)
    stats_ref[...] = jnp.where(ridx == 0, s, jnp.where(ridx == 1, ss, 0.0))


# -------- pass 2: conv matmul + folded BN scale/shift + residual + leaky_relu -----
def fused_kernel(p_ref, w_ref, scale_ref, shift_ref, o_ref, *, cin, use_residual):
    """p_ref:(TILE_P,KPAD) bf16  w_ref:(KPAD,CPAD) bf16
       scale/shift:(1,CPAD) f32  o_ref:(TILE_P,CPAD) f32."""
    y = jnp.dot(p_ref[...], w_ref[...], preferred_element_type=jnp.float32)
    y = y * scale_ref[...] + shift_ref[...]           # folded BN (or bias) epilogue
    if use_residual:
        # Centre-tap-first patch ordering puts the residual pixel in lanes [0, cin).
        cpad = o_ref.shape[-1]                        # CPAD <= KPAD (asserted outside)
        res = p_ref[:, :cpad].astype(jnp.float32)     # aligned lane slice, no roll
        lane = lax.broadcasted_iota(jnp.int32, y.shape, 1)
        y = y + jnp.where(lane < cin, res, 0.0)
    o_ref[...] = jnp.where(y >= 0.0, y, NEG_SLOPE * y)


def cnn_block_forward(x_nchw, w_oihw, bias, gamma, beta, *,
                      padding, use_batch_norm=True, use_residual=True, tile_p=512):
    """Forward pass matching CNNBlock.forward (stride=1)."""
    x_nchw = x_nchw.astype(jnp.float32)
    N, Cin, H, W = x_nchw.shape
    Cout, _, KH, KW = w_oihw.shape
    Ho = H + 2 * padding - (KH - 1)
    Wo = W + 2 * padding - (KW - 1)
    if use_residual:
        assert (Cin, H, W) == (Cout, Ho, Wo), "residual requires matching shapes"

    P = N * Ho * Wo                       # output pixels = matmul rows
    K = KH * KW * Cin                     # contraction size
    CPAD = _round_up(Cout, LANE)          # lane-dense output channels
    KPAD = _round_up(K, LANE)             # lane-dense contraction
    tile_p = _round_up(max(8, min(tile_p, _round_up(P, 8))), 8)
    P_pad = _round_up(P, tile_p)
    n_tiles = P_pad // tile_p

    # ---------------- glue (plain JAX): layout transforms & im2col ----------------
    # TODO(synk): im2col expands HBM reads by KH*KW; with Cin=4 / K=36 the bf16 patch
    #             slab is tiny, so a spatial-domain shifted-matmul kernel is not worth
    #             its lane-sparse NHWC layout at these channel counts.
    taps = [(kh, kw) for kh in range(KH) for kw in range(KW)]
    if use_residual:
        # "same" conv is guaranteed by the shape assert -> a centre tap exists.
        centre = ((KH - 1) // 2, (KW - 1) // 2)
        taps.remove(centre)
        taps = [centre] + taps            # residual pixel lives in lanes [0, Cin)
        assert KPAD >= CPAD               # K >= Cin == Cout when residual is used

    x_nhwc = jnp.transpose(x_nchw, (0, 2, 3, 1)).astype(jnp.bfloat16)   # NCHW -> NHWC
    xp = jnp.pad(x_nhwc, ((0, 0), (padding, padding), (padding, padding), (0, 0)))
    cols = [xp[:, kh:kh + Ho, kw:kw + Wo, :] for kh, kw in taps]
    patches = jnp.stack(cols, axis=3).reshape(P, K)                     # [tap, cin]
    patches = jnp.pad(patches, ((0, P_pad - P), (0, KPAD - K)))         # bf16

    w_hwio = jnp.transpose(w_oihw.astype(jnp.float32), (2, 3, 1, 0))    # (KH,KW,Cin,Cout)
    w_rows = jnp.concatenate([w_hwio[kh, kw] for kh, kw in taps], axis=0)  # (K, Cout)
    w_mat = jnp.pad(w_rows, ((0, KPAD - K), (0, CPAD - Cout))).astype(jnp.bfloat16)

    # ---------------- pass 1 + BN fold into per-channel (scale, shift) ------------
    if use_batch_norm:
        flops1 = 2 * P_pad * KPAD * CPAD
        bytes1 = int(patches.size * 2 + w_mat.size * 2 + n_tiles * 8 * CPAD * 4)
        stats = pl.pallas_call(
            functools.partial(stats_kernel, p_valid=P, tile_p=tile_p),
            grid=(n_tiles,),
            in_specs=[
                pl.BlockSpec((tile_p, KPAD), lambda i: (i, 0)),   # patch row tile
                pl.BlockSpec((KPAD, CPAD), lambda i: (0, 0)),     # resident weights
            ],
            out_specs=pl.BlockSpec((8, CPAD), lambda i: (i, 0)),  # per-tile moments
            out_shape=jax.ShapeDtypeStruct((n_tiles * 8, CPAD), jnp.float32),
            compiler_params=pltpu.CompilerParams(dimension_semantics=("parallel",)),
            cost_estimate=pl.CostEstimate(flops=flops1, transcendentals=0,
                                          bytes_accessed=bytes1),
        )(patches, w_mat)

        # Tiny cross-tile reduction (plain JAX) + BN fold. The conv bias cancels
        # exactly under training-mode BatchNorm (the mean absorbs it), so it never
        # has to be materialised.
        m = stats.reshape(n_tiles, 8, CPAD)
        mean = m[:, 0, :].sum(axis=0) / P
        var = jnp.maximum(m[:, 1, :].sum(axis=0) / P - mean * mean, 0.0)
        g_pad = jnp.pad(gamma.astype(jnp.float32), (0, CPAD - Cout))
        be_pad = jnp.pad(beta.astype(jnp.float32), (0, CPAD - Cout))
        scale_v = g_pad * lax.rsqrt(var + BN_EPS)
        shift_v = be_pad - mean * scale_v
    else:
        scale_v = jnp.ones((CPAD,), jnp.float32)
        shift_v = jnp.pad(bias.astype(jnp.float32), (0, CPAD - Cout))
    scale = scale_v.reshape(1, CPAD)
    shift = shift_v.reshape(1, CPAD)

    # ---------------- pass 2: conv + scale/shift + residual + leaky_relu ----------
    flops2 = 2 * P_pad * KPAD * CPAD + 4 * P_pad * CPAD
    bytes2 = int(patches.size * 2 + w_mat.size * 2 + 2 * CPAD * 4 + P_pad * CPAD * 4)
    out_flat = pl.pallas_call(
        functools.partial(fused_kernel, cin=Cin, use_residual=use_residual),
        grid=(n_tiles,),
        in_specs=[
            pl.BlockSpec((tile_p, KPAD), lambda i: (i, 0)),       # patch row tile
            pl.BlockSpec((KPAD, CPAD), lambda i: (0, 0)),         # resident weights
            pl.BlockSpec((1, CPAD), lambda i: (0, 0)),            # folded scale
            pl.BlockSpec((1, CPAD), lambda i: (0, 0)),            # folded shift
        ],
        out_specs=pl.BlockSpec((tile_p, CPAD), lambda i: (i, 0)), # lane-dense store
        out_shape=jax.ShapeDtypeStruct((P_pad, CPAD), jnp.float32),
        compiler_params=pltpu.CompilerParams(dimension_semantics=("parallel",)),
        cost_estimate=pl.CostEstimate(flops=flops2, transcendentals=0,
                                      bytes_accessed=bytes2),
    )(patches, w_mat, scale, shift)

    out_nhwc = out_flat[:P, :Cout].reshape(N, Ho, Wo, Cout)
    return jnp.transpose(out_nhwc, (0, 3, 1, 2))                 # back to NCHW


def reference_forward(x_nchw, w_oihw, bias, gamma, beta, *,
                      padding, use_batch_norm=True, use_residual=True):
    """Pure-JAX f32 reference for the same semantics (NCHW)."""
    y = lax.conv_general_dilated(
        x_nchw.astype(jnp.float32), w_oihw.astype(jnp.float32),
        window_strides=(1, 1),
        padding=[(padding, padding), (padding, padding)],
        dimension_numbers=("NCHW", "OIHW", "NCHW"),
        precision=lax.Precision.HIGHEST)
    y = y + bias.reshape(1, -1, 1, 1)
    if use_batch_norm:
        mean = jnp.mean(y, axis=(0, 2, 3), keepdims=True)
        var = jnp.mean((y - mean) ** 2, axis=(0, 2, 3), keepdims=True)
        y = (y - mean) * lax.rsqrt(var + BN_EPS)
        y = y * gamma.reshape(1, -1, 1, 1) + beta.reshape(1, -1, 1, 1)
    if use_residual:
        y = y + x_nchw
    return jnp.where(y >= 0.0, y, NEG_SLOPE * y)


if __name__ == "__main__":
    # CNNBlock(channels_in=4, channels_out=4, kernel_size=3, stride=1, padding=1,
    #          use_batch_norm=True, use_residual=True)
    N, C, H, W = 2, 4, 16, 16
    KH = KW = 3
    PAD = 1

    key = jax.random.PRNGKey(0)
    kx, kw = jax.random.split(key)
    x = jax.random.normal(kx, (N, C, H, W), dtype=jnp.float32)
    # deterministic synthetic conv weight (stands in for orthogonal * leaky_relu gain)
    w = 0.3 * jax.random.normal(kw, (C, C, KH, KW), dtype=jnp.float32)
    b = jnp.zeros((C,), jnp.float32)        # bias.data.fill_(0)
    gamma = jnp.ones((C,), jnp.float32)     # BatchNorm2d affine init
    beta = jnp.zeros((C,), jnp.float32)

    # tile_p=128 -> 4 row tiles over the 512 output pixels (exercises the grid).
    fwd = jax.jit(functools.partial(cnn_block_forward, padding=PAD,
                                    use_batch_norm=True, use_residual=True,
                                    tile_p=128))
    out = jax.block_until_ready(fwd(x, w, b, gamma, beta))

    ref = jax.block_until_ready(
        reference_forward(x, w, b, gamma, beta, padding=PAD,
                          use_batch_norm=True, use_residual=True))

    assert out.shape == (N, C, H, W), out.shape
    max_err = float(jnp.max(jnp.abs(out - ref)))
    # bf16 MXU operands / bf16 residual slab (f32 accumulation) vs f32 HIGHEST reference.
    assert jnp.allclose(out, ref, rtol=3e-2, atol=3e-2), max_err
    print("KERNEL_OK")
</pallas_src>

<mosaic_0001>
module attributes {stable_mosaic.version = 11 : i64} {
  func.func @stats_kernel(%arg0: i32, %arg1: memref<128x128xbf16, #tpu.memory_space<vmem>>, %arg2: memref<128x128xbf16, #tpu.memory_space<vmem>>, %arg3: memref<8x128xf32, #tpu.memory_space<vmem>>) attributes {dimension_semantics = [#tpu.dimension_semantics<parallel>], iteration_bounds = array<i64: 4>, scalar_prefetch = 0 : i64, scratch_operands = 0 : i64, tpu.core_type = #tpu.core_type<tc>, window_params = [{transform_indices = @transform_0, window_bounds = array<i64: 128, 128>}, {pipeline_mode = #tpu.pipeline_mode<synchronous>, transform_indices = @transform_1, window_bounds = array<i64: 128, 128>}, {transform_indices = @transform_2, window_bounds = array<i64: 8, 128>}]} {
    %c0 = arith.constant 0 : index
    %c0_0 = arith.constant 0 : index
    %0 = vector.load %arg1[%c0, %c0_0] : memref<128x128xbf16, #tpu.memory_space<vmem>>, vector<128x128xbf16>
    %c0_1 = arith.constant 0 : index
    %c0_2 = arith.constant 0 : index
    %1 = vector.load %arg2[%c0_1, %c0_2] : memref<128x128xbf16, #tpu.memory_space<vmem>>, vector<128x128xbf16>
    %cst = arith.constant dense<0.000000e+00> : vector<128x128xf32>
    %2 = tpu.matmul %0, %1, %cst {dimension_numbers = #tpu.dot_dimension_numbers<[1], [0], [0], [1], [0, 0, 1, 1], [], []>} : vector<128x128xbf16>, vector<128x128xbf16>, vector<128x128xf32> -> vector<128x128xf32>
    %c128_i32 = arith.constant 128 : i32
    %3 = arith.muli %arg0, %c128_i32 : i32
    %4 = tpu.iota {dimensions = array<i32: 0>} : vector<128x128xi32>
    %5 = vector.broadcast %3 : i32 to vector<128x128xi32>
    %6 = arith.addi %5, %4 : vector<128x128xi32>
    %c512_i32 = arith.constant 512 : i32
    %7 = vector.broadcast %c512_i32 : i32 to vector<128x128xi32>
    %8 = arith.cmpi slt, %6, %7 : vector<128x128xi32>
    %cst_3 = arith.constant 0.000000e+00 : f32
    %9 = vector.broadcast %cst_3 : f32 to vector<128x128xf32>
    %10 = arith.select %8, %2, %9 : vector<128x128xi1>, vector<128x128xf32>
    %cst_4 = arith.constant dense<0.000000e+00> : vector<128xf32>
    %11 = vector.multi_reduction <add>, %10, %cst_4 [0] : vector<128x128xf32> to vector<128xf32>
    %12 = vector.shape_cast %11 : vector<128xf32> to vector<1x128xf32>
    %13 = arith.mulf %10, %10 : vector<128x128xf32>
    %cst_5 = arith.constant dense<0.000000e+00> : vector<128xf32>
    %14 = vector.multi_reduction <add>, %13, %cst_5 [0] : vector<128x128xf32> to vector<128xf32>
    %15 = vector.shape_cast %14 : vector<128xf32> to vector<1x128xf32>
    %16 = tpu.iota {dimensions = array<i32: 0>} : vector<8x128xi32>
    %c0_i32 = arith.constant 0 : i32
    %17 = vector.broadcast %c0_i32 : i32 to vector<8x128xi32>
    %18 = arith.cmpi eq, %16, %17 : vector<8x128xi32>
    %c1_i32 = arith.constant 1 : i32
    %19 = vector.broadcast %c1_i32 : i32 to vector<8x128xi32>
    %20 = arith.cmpi eq, %16, %19 : vector<8x128xi32>
    %cst_6 = arith.constant 0.000000e+00 : f32
    %21 = vector.shape_cast %15 : vector<1x128xf32> to vector<1x128xf32>
    %22 = vector.broadcast %21 : vector<1x128xf32> to vector<8x128xf32>
    %23 = vector.broadcast %cst_6 : f32 to vector<8x128xf32>
    %24 = arith.select %20, %22, %23 : vector<8x128xi1>, vector<8x128xf32>
    %25 = vector.shape_cast %12 : vector<1x128xf32> to vector<1x128xf32>
    %26 = vector.broadcast %25 : vector<1x128xf32> to vector<8x128xf32>
    %27 = arith.select %18, %26, %24 : vector<8x128xi1>, vector<8x128xf32>
    %c0_7 = arith.constant 0 : index
    %c0_8 = arith.constant 0 : index
    %28 = vector.load %arg3[%c0_7, %c0_8] : memref<8x128xf32, #tpu.memory_space<vmem>>, vector<8x128xf32>
    tpu.vector_store %arg3[%c0_7, %c0_8], %27 {strides = array<i32>} : memref<8x128xf32, #tpu.memory_space<vmem>>, vector<8x128xf32>,
    return
  }
  func.func @transform_0(%arg0: i32) -> (i32, i32) {
    %c0_i32 = arith.constant 0 : i32
    %c0_i32_0 = arith.constant 0 : i32
    return %arg0, %c0_i32 : i32, i32
  }
  func.func @transform_1(%arg0: i32) -> (i32, i32) {
    %c0_i32 = arith.constant 0 : i32
    %c0_i32_0 = arith.constant 0 : i32
    %c0_i32_1 = arith.constant 0 : i32
    return %c0_i32, %c0_i32_0 : i32, i32
  }
  func.func @transform_2(%arg0: i32) -> (i32, i32) {
    %c0_i32 = arith.constant 0 : i32
    %c0_i32_0 = arith.constant 0 : i32
    return %arg0, %c0_i32 : i32, i32
  }
}

module attributes {stable_mosaic.version = 11 : i64} {
  func.func @fused_kernel(%arg0: i32, %arg1: memref<128x128xbf16, #tpu.memory_space<vmem>>, %arg2: memref<128x128xbf16, #tpu.memory_space<vmem>>, %arg3: memref<1x128xf32, #tpu.memory_space<vmem>>, %arg4: memref<1x128xf32, #tpu.memory_space<vmem>>, %arg5: memref<128x128xf32, #tpu.memory_space<vmem>>) attributes {dimension_semantics = [#tpu.dimension_semantics<parallel>], iteration_bounds = array<i64: 4>, scalar_prefetch = 0 : i64, scratch_operands = 0 : i64, tpu.core_type = #tpu.core_type<tc>, window_params = [{transform_indices = @transform_0, window_bounds = array<i64: 128, 128>}, {pipeline_mode = #tpu.pipeline_mode<synchronous>, transform_indices = @transform_1, window_bounds = array<i64: 128, 128>}, {pipeline_mode = #tpu.pipeline_mode<synchronous>, transform_indices = @transform_2, window_bounds = array<i64: 1, 128>}, {pipeline_mode = #tpu.pipeline_mode<synchronous>, transform_indices = @transform_3, window_bounds = array<i64: 1, 128>}, {transform_indices = @transform_4, window_bounds = array<i64: 128, 128>}]} {
    %c0 = arith.constant 0 : index
    %c0_0 = arith.constant 0 : index
    %0 = vector.load %arg1[%c0, %c0_0] : memref<128x128xbf16, #tpu.memory_space<vmem>>, vector<128x128xbf16>
    %c0_1 = arith.constant 0 : index
    %c0_2 = arith.constant 0 : index
    %1 = vector.load %arg2[%c0_1, %c0_2] : memref<128x128xbf16, #tpu.memory_space<vmem>>, vector<128x128xbf16>
    %cst = arith.constant dense<0.000000e+00> : vector<128x128xf32>
    %2 = tpu.matmul %0, %1, %cst {dimension_numbers = #tpu.dot_dimension_numbers<[1], [0], [0], [1], [0, 0, 1, 1], [], []>} : vector<128x128xbf16>, vector<128x128xbf16>, vector<128x128xf32> -> vector<128x128xf32>
    %c0_3 = arith.constant 0 : index
    %c0_4 = arith.constant 0 : index
    %3 = vector.load %arg3[%c0_3, %c0_4] : memref<1x128xf32, #tpu.memory_space<vmem>>, vector<1x128xf32>
    %4 = vector.broadcast %3 : vector<1x128xf32> to vector<128x128xf32>
    %5 = arith.mulf %2, %4 : vector<128x128xf32>
    %c0_5 = arith.constant 0 : index
    %c0_6 = arith.constant 0 : index
    %6 = vector.load %arg4[%c0_5, %c0_6] : memref<1x128xf32, #tpu.memory_space<vmem>>, vector<1x128xf32>
    %7 = vector.broadcast %6 : vector<1x128xf32> to vector<128x128xf32>
    %8 = arith.addf %5, %7 : vector<128x128xf32>
    %c0_7 = arith.constant 0 : index
    %c0_8 = arith.constant 0 : index
    %9 = vector.load %arg1[%c0_7, %c0_8] : memref<128x128xbf16, #tpu.memory_space<vmem>>, vector<128x128xbf16>
    %10 = arith.extf %9 : vector<128x128xbf16> to vector<128x128xf32>
    %11 = tpu.iota {dimensions = array<i32: 1>} : vector<128x128xi32>
    %c4_i32 = arith.constant 4 : i32
    %12 = vector.broadcast %c4_i32 : i32 to vector<128x128xi32>
    %13 = arith.cmpi slt, %11, %12 : vector<128x128xi32>
    %cst_9 = arith.constant 0.000000e+00 : f32
    %14 = vector.broadcast %cst_9 : f32 to vector<128x128xf32>
    %15 = arith.select %13, %10, %14 : vector<128x128xi1>, vector<128x128xf32>
    %16 = arith.addf %8, %15 : vector<128x128xf32>
    %cst_10 = arith.constant 0.000000e+00 : f32
    %17 = vector.broadcast %cst_10 : f32 to vector<128x128xf32>
    %18 = arith.cmpf oge, %16, %17 : vector<128x128xf32>
    %cst_11 = arith.constant 0.00999999977 : f32
    %19 = vector.broadcast %cst_11 : f32 to vector<128x128xf32>
    %20 = arith.mulf %19, %16 : vector<128x128xf32>
    %21 = arith.select %18, %16, %20 : vector<128x128xi1>, vector<128x128xf32>
    %c0_12 = arith.constant 0 : index
    %c0_13 = arith.constant 0 : index
    %22 = vector.load %arg5[%c0_12, %c0_13] : memref<128x128xf32, #tpu.memory_space<vmem>>, vector<128x128xf32>
    tpu.vector_store %arg5[%c0_12, %c0_13], %21 {strides = array<i32>} : memref<128x128xf32, #tpu.memory_space<vmem>>, vector<128x128xf32>,
    return
  }
  func.func @transform_0(%arg0: i32) -> (i32, i32) {
    %c0_i32 = arith.constant 0 : i32
    %c0_i32_0 = arith.constant 0 : i32
    return %arg0, %c0_i32 : i32, i32
  }
  func.func @transform_1(%arg0: i32) -> (i32, i32) {
    %c0_i32 = arith.constant 0 : i32
    %c0_i32_0 = arith.constant 0 : i32
    %c0_i32_1 = arith.constant 0 : i32
    return %c0_i32, %c0_i32_0 : i32, i32
  }
  func.func @transform_2(%arg0: i32) -> (i32, i32) {
    %c0_i32 = arith.constant 0 : i32
    %c0_i32_0 = arith.constant 0 : i32
    %c0_i32_1 = arith.constant 0 : i32
    return %c0_i32, %c0_i32_0 : i32, i32
  }
  func.func @transform_3(%arg0: i32) -> (i32, i32) {
    %c0_i32 = arith.constant 0 : i32
    %c0_i32_0 = arith.constant 0 : i32
    %c0_i32_1 = arith.constant 0 : i32
    return %c0_i32, %c0_i32_0 : i32, i32
  }
  func.func @transform_4(%arg0: i32) -> (i32, i32) {
    %c0_i32 = arith.constant 0 : i32
    %c0_i32_0 = arith.constant 0 : i32
    return %arg0, %c0_i32 : i32, i32
  }
}

</mosaic_0001>

<llo_original>
// kernel: cnn_block_forward.2
$region0: #{cnn_block_forward.2}
  #allocation0 [shape = 'u32[]', space=smem, size = 0x4, offset = 0x4, fixed_abs, tag = 'smem constant byte address 0x4 - core index']
  #allocation1 [shape = 'u32[144,128]{1,0:T(1,128)}', space=vmem, size = 0x12000, scoped, tag = 'internal scratch']
  %s0 = inlined_call_operand.vmem [shape: bf16[512,128], index: 0, kind: input, shape index: {}]
  %s1 = inlined_call_operand.vmem [shape: bf16[128,128], index: 1, kind: input, shape index: {}]
  %s2 = inlined_call_operand.vmem [shape: f32[32,128], index: 2, kind: output, shape index: {}]
  %s3 = sld [smem:[#allocation0]]
  $region41: #{cnn_block_forward.2} parent=0
    _
  %s5 = ssub.s32 1, %s3
  %s6 = scalar_select 0, %s5, %s3
  loop: start=0, step=1, limit=6
  $region2: #{cnn_block_forward.2} parent=0 // loop_pre_header
    _
  $region3: #{cnn_block_forward.2} parent=0 // loop_header
    %s8 = sphi 0, %s12
    %p9 = scmp.ge.s32.totalorder %s8, 6
    %s18 = sphi 0, %s20
    %s21 = sphi 0, %s18
    %s22 = sphi 0, %s21
    %s38 = sphi 0, %s22
    %s42 = sphi 0, %s42
    %s44 = sphi 0, %s42
    %s45 = sphi 0, %s44
    %s59 = sphi 0, %s45
    %s65 = sphi 0, %s67
    %s68 = sphi 0, %s65
    %s69 = sphi 0, %s68
    %s85 = sphi 0, %s69
  $region4: #{cnn_block_forward.2} parent=0 // loop_header_branch
    %11 = sbr.rel (%p9) target = $region8
  $region5: #{cnn_block_forward.2} parent=0 // loop_body
    %s13 = ssub.s32 %s8, 1
    %s14 = ssub.s32 %s8, 2
    %s15 = sadd.s32 %s8, 1
    %s16 = ssub.s32 %s8, %s15
    %p17 = scmp.eq.s32.totalorder %s16, 0
    %s19 = sadd.s32 %s18, 1
    %s20 = scalar_select %p17, %s18, %s19
    %p23 = pneg %p17
    %p24 = scmp.eq.s32.totalorder %s8, 3
    %p25 = por %p23, %p24
    %p26 = scmp.ne.s32.totalorder %s18, %s21
    %p27 = scmp.eq.s32.totalorder %s8, 0
    %p28 = por %p26, %p27
    %p29 = scmp.ne.s32.totalorder %s18, %s21
    %p30 = scmp.eq.s32.totalorder %s13, 3
    %p31 = por %p29, %p30
    %p32 = scmp.ne.s32.totalorder %s21, %s22
    %p33 = scmp.eq.s32.totalorder %s13, 0
    %p34 = por %p32, %p33
    %p35 = scmp.ne.s32.totalorder %s21, %s22
    %p36 = scmp.eq.s32.totalorder %s14, 3
    %p37 = por %p35, %p36
    %p39 = scmp.ne.s32.totalorder %s22, %s38
    %p40 = scmp.eq.s32.totalorder %s14, 0
    %p41 = por %p39, %p40
    %s43 = sadd.s32 %s42, 1
    %p46 = scmp.eq.s32.totalorder %s8, 3
    %p47 = scmp.ne.s32.totalorder %s42, %s44
    %p48 = scmp.eq.s32.totalorder %s8, 0
    %p49 = por %p47, %p48
    %p50 = scmp.ne.s32.totalorder %s42, %s44
    %p51 = scmp.eq.s32.totalorder %s13, 3
    %p52 = por %p50, %p51
    %p53 = scmp.ne.s32.totalorder %s44, %s45
    %p54 = scmp.eq.s32.totalorder %s13, 0
    %p55 = por %p53, %p54
    %p56 = scmp.ne.s32.totalorder %s44, %s45
    %p57 = scmp.eq.s32.totalorder %s14, 3
    %p58 = por %p56, %p57
    %p60 = scmp.ne.s32.totalorder %s45, %s59
    %p61 = scmp.eq.s32.totalorder %s14, 0
    %p62 = por %p60, %p61
    %s63 = ssub.s32 %s8, %s15
    %p64 = scmp.eq.s32.totalorder %s63, 0
    %s66 = sadd.s32 %s65, 1
    %s67 = scalar_select %p64, %s65, %s66
    %p70 = pneg %p64
    %p71 = scmp.eq.s32.totalorder %s8, 3
    %p72 = por %p70, %p71
    %p73 = scmp.ne.s32.totalorder %s65, %s68
    %p74 = scmp.eq.s32.totalorder %s8, 0
    %p75 = por %p73, %p74
    %p76 = scmp.ne.s32.totalorder %s65, %s68
    %p77 = scmp.eq.s32.totalorder %s13, 3
    %p78 = por %p76, %p77
    %p79 = scmp.ne.s32.totalorder %s68, %s69
    %p80 = scmp.eq.s32.totalorder %s13, 0
    %p81 = por %p79, %p80
    %p82 = scmp.ne.s32.totalorder %s68, %s69
    %p83 = scmp.eq.s32.totalorder %s14, 3
    %p84 = por %p82, %p83
    %p86 = scmp.ne.s32.totalorder %s69, %s85
    %p87 = scmp.eq.s32.totalorder %s14, 0
    %p88 = por %p86, %p87
    %p89 = scmp.le.s32.totalorder 1, %s8
    %p90 = scmp.lt.s32.totalorder %s8, 5
    %p91 = pnand %p89, %p90
    %p92 = pneg %p91
    // Predicated region
    $region9: #{cnn_block_forward.2} parent=5 // pred_check
      _
    $region10: #{cnn_block_forward.2} parent=5 // pred_check_branch
      %94 = sbr.rel (%p91) target = $region12
    $region11: #{cnn_block_forward.2} parent=5 // pred_region
      %s95 = ssub.s32 %s8, 1
      // Predicated region
      $region13: #{cnn_block_forward.2} parent=11 // pred_check
        %p96 = pneg %p55
      $region14: #{cnn_block_forward.2} parent=11 // pred_check_branch
        %98 = sbr.rel (%p96) target = $region16
      $region15: #{cnn_block_forward.2} parent=11 // pred_region
        _
      $region16: #{cnn_block_forward.2} parent=11 // pred_fallthru
        _
    $region12: #{cnn_block_forward.2} parent=5 // pred_fallthru
      _
    %p99 = scmp.lt.s32.totalorder %s8, 4
    // Predicated region
    $region17: #{cnn_block_forward.2} parent=5 // pred_check
      %p100 = pneg %p99
    $region18: #{cnn_block_forward.2} parent=5 // pred_check_branch
      %102 = sbr.rel (%p100) target = $region20
    $region19: #{cnn_block_forward.2} parent=5 // pred_region
      // Predicated region
      $region21: #{cnn_block_forward.2} parent=19 // pred_check
        %p103 = pneg %p28
      $region22: #{cnn_block_forward.2} parent=19 // pred_check_branch
        %105 = sbr.rel (%p103) target = $region24
      $region23: #{cnn_block_forward.2} parent=19 // pred_region
        %s106 = smul.u32 16, %s8
        %p107 = scmp.lt.s32.totalorder %s106, 63
        %s108 = scalar_select %p107, %s106, 63
        %s109 = smul.addr %s108, 4
        %s110 = scalar_lea.vmem %s0, %s109
        %s111 = smul.u32 16, %s8
      $region24: #{cnn_block_forward.2} parent=19 // pred_fallthru
        _
    $region20: #{cnn_block_forward.2} parent=5 // pred_fallthru
      _
    %p112 = scmp.le.s32.totalorder 1, %s8
    %p113 = scmp.lt.s32.totalorder %s8, 5
    %p114 = pnand %p112, %p113
    %p115 = pneg %p114
    // Predicated region
    $region25: #{cnn_block_forward.2} parent=5 // pred_check
      _
    $region26: #{cnn_block_forward.2} parent=5 // pred_check_branch
      %117 = sbr.rel (%p114) target = $region28
    $region27: #{cnn_block_forward.2} parent=5 // pred_region
      %s118 = ssub.s32 %s8, 1
      %s119 = smul.u32 16, %s13
      %p120 = scmp.lt.s32.totalorder %s119, 63
      %s121 = scalar_select %p120, %s119, 63
      %s122 = smul.addr %s121, 4
      %s123 = scalar_lea.vmem %s0, %s122
      %p124 = pneg %p34
      %p125 = pneg %p31
      %p126 = pneg %p55
      %p127 = pneg %p52
      %p128 = pneg %p81
      %p129 = pneg %p78
      %p130 = scmp.lt.s32.totalorder %s13, 3
      %s131 = scalar_select %p130, %s13, 3
      %s132 = smul.addr %s131, 8
      %s133 = scalar_lea.vmem %s2, %s132
      %s134 = smul.u32 16, %s13
      %p135 = scmp.lt.s32.totalorder %s134, 63
      %s136 = scalar_select %p135, %s134, 63
      %s137 = smul.addr %s136, 4
      %s138 = scalar_lea.vmem %s0, %s137
      %s139 = smul.u32 16, %s13
      %p140 = scmp.lt.s32.totalorder %s13, 3
      %s141 = scalar_select %p140, %s13, 3
      %s142 = smul.addr %s141, 8
      %s143 = scalar_lea.vmem %s2, %s142
      %v145 = vld [vmem:[%s138] sm:$0xf]
      %v146 = vld [vmem:[%s138 + $0x4] sm:$0xf]
      %v147 = vld [vmem:[%s138 + $0x8] sm:$0xf]
      %v148 = vld [vmem:[%s138 + $0xc] sm:$0xf]
      %v149 = vld [vmem:[%s138 + $0x10] sm:$0xf]
      %v150 = vld [vmem:[%s138 + $0x14] sm:$0xf]
      %v151 = vld [vmem:[%s138 + $0x18] sm:$0xf]
      %v152 = vld [vmem:[%s138 + $0x1c] sm:$0xf]
      %v153 = vld [vmem:[%s138 + $0x20] sm:$0xf]
      %v154 = vld [vmem:[%s138 + $0x24] sm:$0xf]
      %v155 = vld [vmem:[%s138 + $0x28] sm:$0xf]
      %v156 = vld [vmem:[%s138 + $0x2c] sm:$0xf]
      %v157 = vld [vmem:[%s138 + $0x30] sm:$0xf]
      %v158 = vld [vmem:[%s138 + $0x34] sm:$0xf]
      %v159 = vld [vmem:[%s138 + $0x38] sm:$0xf]
      %v160 = vld [vmem:[%s138 + $0x3c] sm:$0xf]
      %v161 = vld [vmem:[%s1] sm:$0xf]
      %v162 = vld [vmem:[%s1 + $0x4] sm:$0xf]
      %v163 = vld [vmem:[%s1 + $0x8] sm:$0xf]
      %v164 = vld [vmem:[%s1 + $0xc] sm:$0xf]
      %v165 = vld [vmem:[%s1 + $0x10] sm:$0xf]
      %v166 = vld [vmem:[%s1 + $0x14] sm:$0xf]
      %v167 = vld [vmem:[%s1 + $0x18] sm:$0xf]
      %v168 = vld [vmem:[%s1 + $0x1c] sm:$0xf]
      %v169 = vld [vmem:[%s1 + $0x20] sm:$0xf]
      %v170 = vld [vmem:[%s1 + $0x24] sm:$0xf]
      %v171 = vld [vmem:[%s1 + $0x28] sm:$0xf]
      %v172 = vld [vmem:[%s1 + $0x2c] sm:$0xf]
      %v173 = vld [vmem:[%s1 + $0x30] sm:$0xf]
      %v174 = vld [vmem:[%s1 + $0x34] sm:$0xf]
      %v175 = vld [vmem:[%s1 + $0x38] sm:$0xf]
      %v176 = vld [vmem:[%s1 + $0x3c] sm:$0xf]
      %v193 = vunpack.c.l.b16 %v145
      %v194 = vunpack.c.l.b16 %v146
      %v195 = vunpack.c.l.b16 %v147
      %v196 = vunpack.c.l.b16 %v148
      %v197 = vunpack.c.l.b16 %v149
      %v198 = vunpack.c.l.b16 %v150
      %v199 = vunpack.c.l.b16 %v151
      %v200 = vunpack.c.l.b16 %v152
      %v201 = vunpack.c.l.b16 %v153
      %v202 = vunpack.c.l.b16 %v154
      %v203 = vunpack.c.l.b16 %v155
      %v204 = vunpack.c.l.b16 %v156
      %v205 = vunpack.c.l.b16 %v157
      %v206 = vunpack.c.l.b16 %v158
      %v207 = vunpack.c.l.b16 %v159
      %v208 = vunpack.c.l.b16 %v160
      %v209 = vpack.c.b16 %v194, %v193
      %v210 = vpack.c.b16 %v196, %v195
      %v211 = vpack.c.b16 %v198, %v197
      %v212 = vpack.c.b16 %v200, %v199
      %v213 = vpack.c.b16 %v202, %v201
      %v214 = vpack.c.b16 %v204, %v203
      %v215 = vpack.c.b16 %v206, %v205
      %v216 = vpack.c.b16 %v208, %v207
      %v241 = vunpack.c.l.b16 %v161
      %v242 = vunpack.c.l.b16 %v162
      %v243 = vunpack.c.l.b16 %v163
      %v244 = vunpack.c.l.b16 %v164
      %v245 = vunpack.c.l.b16 %v165
      %v246 = vunpack.c.l.b16 %v166
      %v247 = vunpack.c.l.b16 %v167
      %v248 = vunpack.c.l.b16 %v168
      %v249 = vunpack.c.l.b16 %v169
      %v250 = vunpack.c.l.b16 %v170
      %v251 = vunpack.c.l.b16 %v171
      %v252 = vunpack.c.l.b16 %v172
      %v253 = vunpack.c.l.b16 %v173
      %v254 = vunpack.c.l.b16 %v174
      %v255 = vunpack.c.l.b16 %v175
      %v256 = vunpack.c.l.b16 %v176
      %v257 = vpack.c.b16 %v242, %v241
      %v258 = vpack.c.b16 %v244, %v243
      %v259 = vpack.c.b16 %v246, %v245
      %v260 = vpack.c.b16 %v248, %v247
      %v261 = vpack.c.b16 %v250, %v249
      %v262 = vpack.c.b16 %v252, %v251
      %v263 = vpack.c.b16 %v254, %v253
      %v264 = vpack.c.b16 %v256, %v255
      %273 = vmatprep.subr.bf16.mxu0 0
      %274 = vmatpush1.bf16.msra.mxu0 %v264
      %275 = vmatprep.subr.bf16.mxu0 0
      %276 = vmatpush1.bf16.msra.mxu0 %v263
      %277 = vmatprep.subr.bf16.mxu0 0
      %278 = vmatpush1.bf16.msra.mxu0 %v262
      %279 = vmatprep.subr.bf16.mxu0 0
      %280 = vmatpush1.bf16.msra.mxu0 %v261
      %281 = vmatprep.subr.bf16.mxu0 0
      %282 = vmatpush1.bf16.msra.mxu0 %v260
      %283 = vmatprep.subr.bf16.mxu0 0
      %284 = vmatpush1.bf16.msra.mxu0 %v259
      %285 = vmatprep.subr.bf16.mxu0 0
      %286 = vmatpush1.bf16.msra.mxu0 %v258
      %287 = vmatprep.subr.bf16.mxu0 0
      %288 = vmatpush1.bf16.msra.mxu0 %v257
      %289 = vmatprep.subr.bf16.mxu0 0
      %290 = vmatpush2.bf16.msra.mxu0 0
      %291 = vmatprep.subr.bf16.mxu0 0
      %292 = vmatpush2.bf16.msra.mxu0 0
      %293 = vmatprep.subr.bf16.mxu0 0
      %294 = vmatpush2.bf16.msra.mxu0 0
      %295 = vmatprep.subr.bf16.mxu0 0
      %296 = vmatpush2.bf16.msra.mxu0 0
      %297 = vmatprep.subr.bf16.mxu0 0
      %298 = vmatpush2.bf16.msra.mxu0 0
      %299 = vmatprep.subr.bf16.mxu0 0
      %300 = vmatpush2.bf16.msra.mxu0 0
      %301 = vmatprep.subr.bf16.mxu0 0
      %302 = vmatpush2.bf16.msra.mxu0 0
      %303 = vmatprep.subr.bf16.mxu0 0
      %304 = vmatpush2.bf16.msra.mxu0 0
      %305 = vmatprep.mubr.bf16.mxu0 0
      %306 = vmatmul.mubr.bf16.gmra.mxu0 %v209
      %v307 = vpop.f32.mrf.mxu0
      %v308 = vadd.f32 0.0, %v307
      %v309 = vpop.f32.mrf.mxu0
      %v310 = vpop.f32.mrf.mxu0
      %v311 = vadd.f32 0.0, %v310
      %v312 = vpop.f32.mrf.mxu0
      %313 = vmatprep.mubr.bf16.mxu0 0
      %314 = vmatmul.mubr.bf16.gmra.mxu0 %v210
      %v315 = vpop.f32.mrf.mxu0
      %v316 = vadd.f32 0.0, %v315
      %v317 = vpop.f32.mrf.mxu0
      %v318 = vpop.f32.mrf.mxu0
      %v319 = vadd.f32 0.0, %v318
      %v320 = vpop.f32.mrf.mxu0
      %321 = vmatprep.mubr.bf16.mxu0 0
      %322 = vmatmul.mubr.bf16.gmra.mxu0 %v211
      %v323 = vpop.f32.mrf.mxu0
      %v324 = vadd.f32 0.0, %v323
      %v325 = vpop.f32.mrf.mxu0
      %v326 = vpop.f32.mrf.mxu0
      %v327 = vadd.f32 0.0, %v326
      %v328 = vpop.f32.mrf.mxu0
      %329 = vmatprep.mubr.bf16.mxu0 0
      %330 = vmatmul.mubr.bf16.gmra.mxu0 %v212
      %v331 = vpop.f32.mrf.mxu0
      %v332 = vadd.f32 0.0, %v331
      %v333 = vpop.f32.mrf.mxu0
      %v334 = vpop.f32.mrf.mxu0
      %v335 = vadd.f32 0.0, %v334
      %v336 = vpop.f32.mrf.mxu0
      %337 = vmatprep.mubr.bf16.mxu0 0
      %338 = vmatmul.mubr.bf16.gmra.mxu0 %v213
      %v339 = vpop.f32.mrf.mxu0
      %v340 = vadd.f32 0.0, %v339
      %v341 = vpop.f32.mrf.mxu0
      %v342 = vpop.f32.mrf.mxu0
      %v343 = vadd.f32 0.0, %v342
      %v344 = vpop.f32.mrf.mxu0
      %345 = vmatprep.mubr.bf16.mxu0 0
      %346 = vmatmul.mubr.bf16.gmra.mxu0 %v214
      %v347 = vpop.f32.mrf.mxu0
      %v348 = vadd.f32 0.0, %v347
      %v349 = vpop.f32.mrf.mxu0
      %v350 = vpop.f32.mrf.mxu0
      %v351 = vadd.f32 0.0, %v350
      %v352 = vpop.f32.mrf.mxu0
      %353 = vmatprep.mubr.bf16.mxu0 0
      %354 = vmatmul.mubr.bf16.gmra.mxu0 %v215
      %v355 = vpop.f32.mrf.mxu0
      %v356 = vadd.f32 0.0, %v355
      %v357 = vpop.f32.mrf.mxu0
      %v358 = vpop.f32.mrf.mxu0
      %v359 = vadd.f32 0.0, %v358
      %v360 = vpop.f32.mrf.mxu0
      %361 = vmatprep.mubr.bf16.mxu0 0
      %362 = vmatmul.mubr.bf16.gmra.mxu0 %v216
      %v363 = vpop.f32.mrf.mxu0
      %v364 = vadd.f32 0.0, %v363
      %v365 = vpop.f32.mrf.mxu0
      %v366 = vpop.f32.mrf.mxu0
      %v367 = vadd.f32 0.0, %v366
      %v368 = vpop.f32.mrf.mxu0
      %369 = vdwg.mxu0
      %s370 = smul.u32 %s13, 128
      %v371 = vlaneseq
      %v372 = vshrl.u32 %v371, 7
      %v373 = vadd.s32 %v372, 8
      %v374 = vadd.s32 %v372, 16
      %v375 = vadd.s32 %v372, 24
      %v376 = vadd.s32 %v372, 32
      %v377 = vadd.s32 %v372, 40
      %v378 = vadd.s32 %v372, 48
      %v379 = vadd.s32 %v372, 56
      %v380 = vadd.s32 %v372, 64
      %v381 = vadd.s32 %v372, 72
      %v382 = vadd.s32 %v372, 80
      %v383 = vadd.s32 %v372, 88
      %v384 = vadd.s32 %v372, 96
      %v385 = vadd.s32 %v372, 104
      %v386 = vadd.s32 %v372, 112
      %v387 = vadd.s32 %v372, 120
      %v388 = vstv %s370
      %v389 = vadd.s32 %v388, %v372
      %v390 = vadd.s32 %v388, %v373
      %v391 = vadd.s32 %v388, %v374
      %v392 = vadd.s32 %v388, %v375
      %v393 = vadd.s32 %v388, %v376
      %v394 = vadd.s32 %v388, %v377
      %v395 = vadd.s32 %v388, %v378
      %v396 = vadd.s32 %v388, %v379
      %v397 = vadd.s32 %v388, %v380
      %v398 = vadd.s32 %v388, %v381
      %v399 = vadd.s32 %v388, %v382
      %v400 = vadd.s32 %v388, %v383
      %v401 = vadd.s32 %v388, %v384
      %v402 = vadd.s32 %v388, %v385
      %v403 = vadd.s32 %v388, %v386
      %v404 = vadd.s32 %v388, %v387
      %vm405 = vcmp.lt.s32.totalorder %v389, 512
      %vm406 = vcmp.lt.s32.totalorder %v390, 512
      %vm407 = vcmp.lt.s32.totalorder %v391, 512
      %vm408 = vcmp.lt.s32.totalorder %v392, 512
      %vm409 = vcmp.lt.s32.totalorder %v393, 512
      %vm410 = vcmp.lt.s32.totalorder %v394, 512
      %vm411 = vcmp.lt.s32.totalorder %v395, 512
      %vm412 = vcmp.lt.s32.totalorder %v396, 512
      %vm413 = vcmp.lt.s32.totalorder %v397, 512
      %vm414 = vcmp.lt.s32.totalorder %v398, 512
      %vm415 = vcmp.lt.s32.totalorder %v399, 512
      %vm416 = vcmp.lt.s32.totalorder %v400, 512
      %vm417 = vcmp.lt.s32.totalorder %v401, 512
      %vm418 = vcmp.lt.s32.totalorder %v402, 512
      %vm419 = vcmp.lt.s32.totalorder %v403, 512
      %vm420 = vcmp.lt.s32.totalorder %v404, 512
      %v421 = vsel %vm405, %v308, 0.0
      %v422 = vsel %vm406, %v311, 0.0
      %v423 = vsel %vm407, %v316, 0.0
      %v424 = vsel %vm408, %v319, 0.0
      %v425 = vsel %vm409, %v324, 0.0
      %v426 = vsel %vm410, %v327, 0.0
      %v427 = vsel %vm411, %v332, 0.0
      %v428 = vsel %vm412, %v335, 0.0
      %v429 = vsel %vm413, %v340, 0.0
      %v430 = vsel %vm414, %v343, 0.0
      %v431 = vsel %vm415, %v348, 0.0
      %v432 = vsel %vm416, %v351, 0.0
      %v433 = vsel %vm417, %v356, 0.0
      %v434 = vsel %vm418, %v359, 0.0
      %v435 = vsel %vm419, %v364, 0.0
      %v436 = vsel %vm420, %v367, 0.0
      %v437 = vadd.f32 %v421, %v422
      %v438 = vadd.f32 %v437, %v423
      %v439 = vadd.f32 %v438, %v424
      %v440 = vadd.f32 %v439, %v425
      %v441 = vadd.f32 %v440, %v426
      %v442 = vadd.f32 %v441, %v427
      %v443 = vadd.f32 %v442, %v428
      %v444 = vadd.f32 %v443, %v429
      %v445 = vadd.f32 %v444, %v430
      %v446 = vadd.f32 %v445, %v431
      %v447 = vadd.f32 %v446, %v432
      %v448 = vadd.f32 %v447, %v433
      %v449 = vadd.f32 %v448, %v434
      %v450 = vadd.f32 %v449, %v435
      %v451 = vadd.f32 %v450, %v436
      %v452 = vrot.slane %v451, 4
      %v453 = vadd.f32 %v451, %v452
      %v454 = vrot.slane %v453, 2
      %v455 = vadd.f32 %v453, %v454
      %v456 = vrot.slane %v455, 1
      %v457 = vadd.f32 %v455, %v456
      %v458 = vmul.f32 %v421, %v421
      %v459 = vmul.f32 %v422, %v422
      %v460 = vmul.f32 %v423, %v423
      %v461 = vmul.f32 %v424, %v424
      %v462 = vmul.f32 %v425, %v425
      %v463 = vmul.f32 %v426, %v426
      %v464 = vmul.f32 %v427, %v427
      %v465 = vmul.f32 %v428, %v428
      %v466 = vmul.f32 %v429, %v429
      %v467 = vmul.f32 %v430, %v430
      %v468 = vmul.f32 %v431, %v431
      %v469 = vmul.f32 %v432, %v432
      %v470 = vmul.f32 %v433, %v433
      %v471 = vmul.f32 %v434, %v434
      %v472 = vmul.f32 %v435, %v435
      %v473 = vmul.f32 %v436, %v436
      %v474 = vadd.f32 %v458, %v459
      %v475 = vadd.f32 %v474, %v460
      %v476 = vadd.f32 %v475, %v461
      %v477 = vadd.f32 %v476, %v462
      %v478 = vadd.f32 %v477, %v463
      %v479 = vadd.f32 %v478, %v464
      %v480 = vadd.f32 %v479, %v465
      %v481 = vadd.f32 %v480, %v466
      %v482 = vadd.f32 %v481, %v467
      %v483 = vadd.f32 %v482, %v468
      %v484 = vadd.f32 %v483, %v469
      %v485 = vadd.f32 %v484, %v470
      %v486 = vadd.f32 %v485, %v471
      %v487 = vadd.f32 %v486, %v472
      %v488 = vadd.f32 %v487, %v473
      %v489 = vrot.slane %v488, 4
      %v490 = vadd.f32 %v488, %v489
      %v491 = vrot.slane %v490, 2
      %v492 = vadd.f32 %v490, %v491
      %v493 = vrot.slane %v492, 1
      %v494 = vadd.f32 %v492, %v493
      %vm495 = vcmp.eq.s32.totalorder %v372, 0
      %vm496 = vcmp.eq.s32.totalorder %v372, 1
      %v497 = vsel %vm496, %v494, 0.0
      %v498 = vsel %vm495, %v457, %v497
      %499 = vst [vmem:[%s143] sm:$0xff] %v498
      %p500 = scmp.lt.s32.totalorder %s13, 3
      %s501 = scalar_select %p500, %s13, 3
      %s502 = smul.addr %s501, 8
      %s503 = scalar_lea.vmem %s2, %s502
      // Predicated region
      $region29: #{cnn_block_forward.2} parent=27 // pred_check
        %p504 = pneg %p78
      $region30: #{cnn_block_forward.2} parent=27 // pred_check_branch
        %506 = sbr.rel (%p504) target = $region32
      $region31: #{cnn_block_forward.2} parent=27 // pred_region
        _
      $region32: #{cnn_block_forward.2} parent=27 // pred_fallthru
        _
    $region28: #{cnn_block_forward.2} parent=5 // pred_fallthru
      _
    %p507 = scmp.le.s32.totalorder 2, %s8
    // Predicated region
    $region33: #{cnn_block_forward.2} parent=5 // pred_check
      %p508 = pneg %p507
    $region34: #{cnn_block_forward.2} parent=5 // pred_check_branch
      %510 = sbr.rel (%p508) target = $region36
    $region35: #{cnn_block_forward.2} parent=5 // pred_region
      %s511 = ssub.s32 %s8, 2
      // Predicated region
      $region37: #{cnn_block_forward.2} parent=35 // pred_check
        %p512 = pneg %p84
      $region38: #{cnn_block_forward.2} parent=35 // pred_check_branch
        %514 = sbr.rel (%p512) target = $region40
      $region39: #{cnn_block_forward.2} parent=35 // pred_region
        %p515 = scmp.lt.s32.totalorder %s14, 3
        %s516 = scalar_select %p515, %s14, 3
        %s517 = smul.addr %s516, 8
        %s518 = scalar_lea.vmem %s2, %s517
      $region40: #{cnn_block_forward.2} parent=35 // pred_fallthru
        _
    $region36: #{cnn_block_forward.2} parent=5 // pred_fallthru
      _
  $region6: #{cnn_block_forward.2} parent=0 // loop_footer
    %s12 = sadd.s32 1, %s8
  $region7: #{cnn_block_forward.2} parent=0 // loop_footer_branch
    %7 = sbr.rel target = $region3
  $region8: #{cnn_block_forward.2} parent=0 // loop_exit
    _

// kernel: cnn_block_forward.3
$region0: #{cnn_block_forward.3}
  #allocation0 [shape = 'u32[]', space=smem, size = 0x4, offset = 0x4, fixed_abs, tag = 'smem constant byte address 0x4 - core index']
  #allocation1 [shape = 'u32[144,128]{1,0:T(1,128)}', space=vmem, size = 0x12000, scoped, tag = 'internal scratch']
  %s0 = inlined_call_operand.vmem [shape: bf16[512,128], index: 0, kind: input, shape index: {}]
  %s1 = inlined_call_operand.vmem [shape: bf16[128,128], index: 1, kind: input, shape index: {}]
  %s2 = inlined_call_operand.vmem [shape: f32[1,128], index: 2, kind: input, shape index: {}]
  %s3 = inlined_call_operand.vmem [shape: f32[1,128], index: 3, kind: input, shape index: {}]
  %s4 = inlined_call_operand.vmem [shape: f32[512,128], index: 4, kind: output, shape index: {}]
  %s5 = sld [smem:[#allocation0]]
  $region49: #{cnn_block_forward.3} parent=0
    _
  %s7 = ssub.s32 1, %s5
  %s8 = scalar_select 0, %s7, %s5
  loop: start=0, step=1, limit=6
  $region2: #{cnn_block_forward.3} parent=0 // loop_pre_header
    _
  $region3: #{cnn_block_forward.3} parent=0 // loop_header
    %s10 = sphi 0, %s14
    %p11 = scmp.ge.s32.totalorder %s10, 6
    %s20 = sphi 0, %s22
    %s23 = sphi 0, %s20
    %s24 = sphi 0, %s23
    %s40 = sphi 0, %s24
    %s44 = sphi 0, %s44
    %s46 = sphi 0, %s44
    %s47 = sphi 0, %s46
    %s61 = sphi 0, %s47
    %s65 = sphi 0, %s65
    %s67 = sphi 0, %s65
    %s68 = sphi 0, %s67
    %s82 = sphi 0, %s68
    %s86 = sphi 0, %s86
    %s88 = sphi 0, %s86
    %s89 = sphi 0, %s88
    %s103 = sphi 0, %s89
    %s109 = sphi 0, %s111
    %s112 = sphi 0, %s109
    %s113 = sphi 0, %s112
    %s129 = sphi 0, %s113
  $region4: #{cnn_block_forward.3} parent=0 // loop_header_branch
    %13 = sbr.rel (%p11) target = $region8
  $region5: #{cnn_block_forward.3} parent=0 // loop_body
    %s15 = ssub.s32 %s10, 1
    %s16 = ssub.s32 %s10, 2
    %s17 = sadd.s32 %s10, 1
    %s18 = ssub.s32 %s10, %s17
    %p19 = scmp.eq.s32.totalorder %s18, 0
    %s21 = sadd.s32 %s20, 1
    %s22 = scalar_select %p19, %s20, %s21
    %p25 = pneg %p19
    %p26 = scmp.eq.s32.totalorder %s10, 3
    %p27 = por %p25, %p26
    %p28 = scmp.ne.s32.totalorder %s20, %s23
    %p29 = scmp.eq.s32.totalorder %s10, 0
    %p30 = por %p28, %p29
    %p31 = scmp.ne.s32.totalorder %s20, %s23
    %p32 = scmp.eq.s32.totalorder %s15, 3
    %p33 = por %p31, %p32
    %p34 = scmp.ne.s32.totalorder %s23, %s24
    %p35 = scmp.eq.s32.totalorder %s15, 0
    %p36 = por %p34, %p35
    %p37 = scmp.ne.s32.totalorder %s23, %s24
    %p38 = scmp.eq.s32.totalorder %s16, 3
    %p39 = por %p37, %p38
    %p41 = scmp.ne.s32.totalorder %s24, %s40
    %p42 = scmp.eq.s32.totalorder %s16, 0
    %p43 = por %p41, %p42
    %s45 = sadd.s32 %s44, 1
    %p48 = scmp.eq.s32.totalorder %s10, 3
    %p49 = scmp.ne.s32.totalorder %s44, %s46
    %p50 = scmp.eq.s32.totalorder %s10, 0
    %p51 = por %p49, %p50
    %p52 = scmp.ne.s32.totalorder %s44, %s46
    %p53 = scmp.eq.s32.totalorder %s15, 3
    %p54 = por %p52, %p53
    %p55 = scmp.ne.s32.totalorder %s46, %s47
    %p56 = scmp.eq.s32.totalorder %s15, 0
    %p57 = por %p55, %p56
    %p58 = scmp.ne.s32.totalorder %s46, %s47
    %p59 = scmp.eq.s32.totalorder %s16, 3
    %p60 = por %p58, %p59
    %p62 = scmp.ne.s32.totalorder %s47, %s61
    %p63 = scmp.eq.s32.totalorder %s16, 0
    %p64 = por %p62, %p63
    %s66 = sadd.s32 %s65, 1
    %p69 = scmp.eq.s32.totalorder %s10, 3
    %p70 = scmp.ne.s32.totalorder %s65, %s67
    %p71 = scmp.eq.s32.totalorder %s10, 0
    %p72 = por %p70, %p71
    %p73 = scmp.ne.s32.totalorder %s65, %s67
    %p74 = scmp.eq.s32.totalorder %s15, 3
    %p75 = por %p73, %p74
    %p76 = scmp.ne.s32.totalorder %s67, %s68
    %p77 = scmp.eq.s32.totalorder %s15, 0
    %p78 = por %p76, %p77
    %p79 = scmp.ne.s32.totalorder %s67, %s68
    %p80 = scmp.eq.s32.totalorder %s16, 3
    %p81 = por %p79, %p80
    %p83 = scmp.ne.s32.totalorder %s68, %s82
    %p84 = scmp.eq.s32.totalorder %s16, 0
    %p85 = por %p83, %p84
    %s87 = sadd.s32 %s86, 1
    %p90 = scmp.eq.s32.totalorder %s10, 3
    %p91 = scmp.ne.s32.totalorder %s86, %s88
    %p92 = scmp.eq.s32.totalorder %s10, 0
    %p93 = por %p91, %p92
    %p94 = scmp.ne.s32.totalorder %s86, %s88
    %p95 = scmp.eq.s32.totalorder %s15, 3
    %p96 = por %p94, %p95
    %p97 = scmp.ne.s32.totalorder %s88, %s89
    %p98 = scmp.eq.s32.totalorder %s15, 0
    %p99 = por %p97, %p98
    %p100 = scmp.ne.s32.totalorder %s88, %s89
    %p101 = scmp.eq.s32.totalorder %s16, 3
    %p102 = por %p100, %p101
    %p104 = scmp.ne.s32.totalorder %s89, %s103
    %p105 = scmp.eq.s32.totalorder %s16, 0
    %p106 = por %p104, %p105
    %s107 = ssub.s32 %s10, %s17
    %p108 = scmp.eq.s32.totalorder %s107, 0
    %s110 = sadd.s32 %s109, 1
    %s111 = scalar_select %p108, %s109, %s110
    %p114 = pneg %p108
    %p115 = scmp.eq.s32.totalorder %s10, 3
    %p116 = por %p114, %p115
    %p117 = scmp.ne.s32.totalorder %s109, %s112
    %p118 = scmp.eq.s32.totalorder %s10, 0
    %p119 = por %p117, %p118
    %p120 = scmp.ne.s32.totalorder %s109, %s112
    %p121 = scmp.eq.s32.totalorder %s15, 3
    %p122 = por %p120, %p121
    %p123 = scmp.ne.s32.totalorder %s112, %s113
    %p124 = scmp.eq.s32.totalorder %s15, 0
    %p125 = por %p123, %p124
    %p126 = scmp.ne.s32.totalorder %s112, %s113
    %p127 = scmp.eq.s32.totalorder %s16, 3
    %p128 = por %p126, %p127
    %p130 = scmp.ne.s32.totalorder %s113, %s129
    %p131 = scmp.eq.s32.totalorder %s16, 0
    %p132 = por %p130, %p131
    %p133 = scmp.le.s32.totalorder 1, %s10
    %p134 = scmp.lt.s32.totalorder %s10, 5
    %p135 = pnand %p133, %p134
    %p136 = pneg %p135
    // Predicated region
    $region9: #{cnn_block_forward.3} parent=5 // pred_check
      _
    $region10: #{cnn_block_forward.3} parent=5 // pred_check_branch
      %138 = sbr.rel (%p135) target = $region12
    $region11: #{cnn_block_forward.3} parent=5 // pred_region
      %s139 = ssub.s32 %s10, 1
      // Predicated region
      $region13: #{cnn_block_forward.3} parent=11 // pred_check
        %p140 = pneg %p57
      $region14: #{cnn_block_forward.3} parent=11 // pred_check_branch
        %142 = sbr.rel (%p140) target = $region16
      $region15: #{cnn_block_forward.3} parent=11 // pred_region
        _
      $region16: #{cnn_block_forward.3} parent=11 // pred_fallthru
        _
      // Predicated region
      $region17: #{cnn_block_forward.3} parent=11 // pred_check
        %p143 = pneg %p78
      $region18: #{cnn_block_forward.3} parent=11 // pred_check_branch
        %145 = sbr.rel (%p143) target = $region20
      $region19: #{cnn_block_forward.3} parent=11 // pred_region
        _
      $region20: #{cnn_block_forward.3} parent=11 // pred_fallthru
        _
      // Predicated region
      $region21: #{cnn_block_forward.3} parent=11 // pred_check
        %p146 = pneg %p99
      $region22: #{cnn_block_forward.3} parent=11 // pred_check_branch
        %148 = sbr.rel (%p146) target = $region24
      $region23: #{cnn_block_forward.3} parent=11 // pred_region
        _
      $region24: #{cnn_block_forward.3} parent=11 // pred_fallthru
        _
    $region12: #{cnn_block_forward.3} parent=5 // pred_fallthru
      _
    %p149 = scmp.lt.s32.totalorder %s10, 4
    // Predicated region
    $region25: #{cnn_block_forward.3} parent=5 // pred_check
      %p150 = pneg %p149
    $region26: #{cnn_block_forward.3} parent=5 // pred_check_branch
      %152 = sbr.rel (%p150) target = $region28
    $region27: #{cnn_block_forward.3} parent=5 // pred_region
      // Predicated region
      $region29: #{cnn_block_forward.3} parent=27 // pred_check
        %p153 = pneg %p30
      $region30: #{cnn_block_forward.3} parent=27 // pred_check_branch
        %155 = sbr.rel (%p153) target = $region32
      $region31: #{cnn_block_forward.3} parent=27 // pred_region
        %s156 = smul.u32 16, %s10
        %p157 = scmp.lt.s32.totalorder %s156, 63
        %s158 = scalar_select %p157, %s156, 63
        %s159 = smul.addr %s158, 4
        %s160 = scalar_lea.vmem %s0, %s159
        %s161 = smul.u32 16, %s10
      $region32: #{cnn_block_forward.3} parent=27 // pred_fallthru
        _
    $region28: #{cnn_block_forward.3} parent=5 // pred_fallthru
      _
    %p162 = scmp.le.s32.totalorder 1, %s10
    %p163 = scmp.lt.s32.totalorder %s10, 5
    %p164 = pnand %p162, %p163
    %p165 = pneg %p164
    // Predicated region
    $region33: #{cnn_block_forward.3} parent=5 // pred_check
      _
    $region34: #{cnn_block_forward.3} parent=5 // pred_check_branch
      %167 = sbr.rel (%p164) target = $region36
    $region35: #{cnn_block_forward.3} parent=5 // pred_region
      %s168 = ssub.s32 %s10, 1
      %s169 = smul.u32 16, %s15
      %p170 = scmp.lt.s32.totalorder %s169, 63
      %s171 = scalar_select %p170, %s169, 63
      %s172 = smul.addr %s171, 4
      %s173 = scalar_lea.vmem %s0, %s172
      %p174 = pneg %p36
      %p175 = pneg %p33
      %p176 = pneg %p57
      %p177 = pneg %p54
      %p178 = pneg %p78
      %p179 = pneg %p75
      %p180 = pneg %p99
      %p181 = pneg %p96
      %p182 = pneg %p125
      %p183 = pneg %p122
      %s184 = smul.u32 16, %s15
      %p185 = scmp.lt.s32.totalorder %s184, 63
      %s186 = scalar_select %p185, %s184, 63
      %s187 = smul.addr %s186, 8
      %s188 = scalar_lea.vmem %s4, %s187
      %s189 = smul.u32 16, %s15
      %p190 = scmp.lt.s32.totalorder %s189, 63
      %s191 = scalar_select %p190, %s189, 63
      %s192 = smul.addr %s191, 4
      %s193 = scalar_lea.vmem %s0, %s192
      %s194 = smul.u32 16, %s15
      %s195 = smul.u32 16, %s15
      %p196 = scmp.lt.s32.totalorder %s195, 63
      %s197 = scalar_select %p196, %s195, 63
      %s198 = smul.addr %s197, 8
      %s199 = scalar_lea.vmem %s4, %s198
      %s200 = smul.u32 16, %s15
      %v202 = vld [vmem:[%s193] sm:$0xf]
      %v203 = vld [vmem:[%s193 + $0x4] sm:$0xf]
      %v204 = vld [vmem:[%s193 + $0x8] sm:$0xf]
      %v205 = vld [vmem:[%s193 + $0xc] sm:$0xf]
      %v206 = vld [vmem:[%s193 + $0x10] sm:$0xf]
      %v207 = vld [vmem:[%s193 + $0x14] sm:$0xf]
      %v208 = vld [vmem:[%s193 + $0x18] sm:$0xf]
      %v209 = vld [vmem:[%s193 + $0x1c] sm:$0xf]
      %v210 = vld [vmem:[%s193 + $0x20] sm:$0xf]
      %v211 = vld [vmem:[%s193 + $0x24] sm:$0xf]
      %v212 = vld [vmem:[%s193 + $0x28] sm:$0xf]
      %v213 = vld [vmem:[%s193 + $0x2c] sm:$0xf]
      %v214 = vld [vmem:[%s193 + $0x30] sm:$0xf]
      %v215 = vld [vmem:[%s193 + $0x34] sm:$0xf]
      %v216 = vld [vmem:[%s193 + $0x38] sm:$0xf]
      %v217 = vld [vmem:[%s193 + $0x3c] sm:$0xf]
      %v218 = vld [vmem:[%s1] sm:$0xf]
      %v219 = vld [vmem:[%s1 + $0x4] sm:$0xf]
      %v220 = vld [vmem:[%s1 + $0x8] sm:$0xf]
      %v221 = vld [vmem:[%s1 + $0xc] sm:$0xf]
      %v222 = vld [vmem:[%s1 + $0x10] sm:$0xf]
      %v223 = vld [vmem:[%s1 + $0x14] sm:$0xf]
      %v224 = vld [vmem:[%s1 + $0x18] sm:$0xf]
      %v225 = vld [vmem:[%s1 + $0x1c] sm:$0xf]
      %v226 = vld [vmem:[%s1 + $0x20] sm:$0xf]
      %v227 = vld [vmem:[%s1 + $0x24] sm:$0xf]
      %v228 = vld [vmem:[%s1 + $0x28] sm:$0xf]
      %v229 = vld [vmem:[%s1 + $0x2c] sm:$0xf]
      %v230 = vld [vmem:[%s1 + $0x30] sm:$0xf]
      %v231 = vld [vmem:[%s1 + $0x34] sm:$0xf]
      %v232 = vld [vmem:[%s1 + $0x38] sm:$0xf]
      %v233 = vld [vmem:[%s1 + $0x3c] sm:$0xf]
      %v250 = vunpack.c.l.b16 %v202
      %v251 = vunpack.c.l.b16 %v203
      %v252 = vunpack.c.l.b16 %v204
      %v253 = vunpack.c.l.b16 %v205
      %v254 = vunpack.c.l.b16 %v206
      %v255 = vunpack.c.l.b16 %v207
      %v256 = vunpack.c.l.b16 %v208
      %v257 = vunpack.c.l.b16 %v209
      %v258 = vunpack.c.l.b16 %v210
      %v259 = vunpack.c.l.b16 %v211
      %v260 = vunpack.c.l.b16 %v212
      %v261 = vunpack.c.l.b16 %v213
      %v262 = vunpack.c.l.b16 %v214
      %v263 = vunpack.c.l.b16 %v215
      %v264 = vunpack.c.l.b16 %v216
      %v265 = vunpack.c.l.b16 %v217
      %v266 = vpack.c.b16 %v251, %v250
      %v267 = vpack.c.b16 %v253, %v252
      %v268 = vpack.c.b16 %v255, %v254
      %v269 = vpack.c.b16 %v257, %v256
      %v270 = vpack.c.b16 %v259, %v258
      %v271 = vpack.c.b16 %v261, %v260
      %v272 = vpack.c.b16 %v263, %v262
      %v273 = vpack.c.b16 %v265, %v264
      %v298 = vunpack.c.l.b16 %v218
      %v299 = vunpack.c.l.b16 %v219
      %v300 = vunpack.c.l.b16 %v220
      %v301 = vunpack.c.l.b16 %v221
      %v302 = vunpack.c.l.b16 %v222
      %v303 = vunpack.c.l.b16 %v223
      %v304 = vunpack.c.l.b16 %v224
      %v305 = vunpack.c.l.b16 %v225
      %v306 = vunpack.c.l.b16 %v226
      %v307 = vunpack.c.l.b16 %v227
      %v308 = vunpack.c.l.b16 %v228
      %v309 = vunpack.c.l.b16 %v229
      %v310 = vunpack.c.l.b16 %v230
      %v311 = vunpack.c.l.b16 %v231
      %v312 = vunpack.c.l.b16 %v232
      %v313 = vunpack.c.l.b16 %v233
      %v314 = vpack.c.b16 %v299, %v298
      %v315 = vpack.c.b16 %v301, %v300
      %v316 = vpack.c.b16 %v303, %v302
      %v317 = vpack.c.b16 %v305, %v304
      %v318 = vpack.c.b16 %v307, %v306
      %v319 = vpack.c.b16 %v309, %v308
      %v320 = vpack.c.b16 %v311, %v310
      %v321 = vpack.c.b16 %v313, %v312
      %330 = vmatprep.subr.bf16.mxu0 0
      %331 = vmatpush1.bf16.msra.mxu0 %v321
      %332 = vmatprep.subr.bf16.mxu0 0
      %333 = vmatpush1.bf16.msra.mxu0 %v320
      %334 = vmatprep.subr.bf16.mxu0 0
      %335 = vmatpush1.bf16.msra.mxu0 %v319
      %336 = vmatprep.subr.bf16.mxu0 0
      %337 = vmatpush1.bf16.msra.mxu0 %v318
      %338 = vmatprep.subr.bf16.mxu0 0
      %339 = vmatpush1.bf16.msra.mxu0 %v317
      %340 = vmatprep.subr.bf16.mxu0 0
      %341 = vmatpush1.bf16.msra.mxu0 %v316
      %342 = vmatprep.subr.bf16.mxu0 0
      %343 = vmatpush1.bf16.msra.mxu0 %v315
      %344 = vmatprep.subr.bf16.mxu0 0
      %345 = vmatpush1.bf16.msra.mxu0 %v314
      %346 = vmatprep.subr.bf16.mxu0 0
      %347 = vmatpush2.bf16.msra.mxu0 0
      %348 = vmatprep.subr.bf16.mxu0 0
      %349 = vmatpush2.bf16.msra.mxu0 0
      %350 = vmatprep.subr.bf16.mxu0 0
      %351 = vmatpush2.bf16.msra.mxu0 0
      %352 = vmatprep.subr.bf16.mxu0 0
      %353 = vmatpush2.bf16.msra.mxu0 0
      %354 = vmatprep.subr.bf16.mxu0 0
      %355 = vmatpush2.bf16.msra.mxu0 0
      %356 = vmatprep.subr.bf16.mxu0 0
      %357 = vmatpush2.bf16.msra.mxu0 0
      %358 = vmatprep.subr.bf16.mxu0 0
      %359 = vmatpush2.bf16.msra.mxu0 0
      %360 = vmatprep.subr.bf16.mxu0 0
      %361 = vmatpush2.bf16.msra.mxu0 0
      %362 = vmatprep.mubr.bf16.mxu0 0
      %363 = vmatmul.mubr.bf16.gmra.mxu0 %v266
      %v364 = vpop.f32.mrf.mxu0
      %v365 = vadd.f32 0.0, %v364
      %v366 = vpop.f32.mrf.mxu0
      %v367 = vpop.f32.mrf.mxu0
      %v368 = vadd.f32 0.0, %v367
      %v369 = vpop.f32.mrf.mxu0
      %370 = vmatprep.mubr.bf16.mxu0 0
      %371 = vmatmul.mubr.bf16.gmra.mxu0 %v267
      %v372 = vpop.f32.mrf.mxu0
      %v373 = vadd.f32 0.0, %v372
      %v374 = vpop.f32.mrf.mxu0
      %v375 = vpop.f32.mrf.mxu0
      %v376 = vadd.f32 0.0, %v375
      %v377 = vpop.f32.mrf.mxu0
      %378 = vmatprep.mubr.bf16.mxu0 0
      %379 = vmatmul.mubr.bf16.gmra.mxu0 %v268
      %v380 = vpop.f32.mrf.mxu0
      %v381 = vadd.f32 0.0, %v380
      %v382 = vpop.f32.mrf.mxu0
      %v383 = vpop.f32.mrf.mxu0
      %v384 = vadd.f32 0.0, %v383
      %v385 = vpop.f32.mrf.mxu0
      %386 = vmatprep.mubr.bf16.mxu0 0
      %387 = vmatmul.mubr.bf16.gmra.mxu0 %v269
      %v388 = vpop.f32.mrf.mxu0
      %v389 = vadd.f32 0.0, %v388
      %v390 = vpop.f32.mrf.mxu0
      %v391 = vpop.f32.mrf.mxu0
      %v392 = vadd.f32 0.0, %v391
      %v393 = vpop.f32.mrf.mxu0
      %394 = vmatprep.mubr.bf16.mxu0 0
      %395 = vmatmul.mubr.bf16.gmra.mxu0 %v270
      %v396 = vpop.f32.mrf.mxu0
      %v397 = vadd.f32 0.0, %v396
      %v398 = vpop.f32.mrf.mxu0
      %v399 = vpop.f32.mrf.mxu0
      %v400 = vadd.f32 0.0, %v399
      %v401 = vpop.f32.mrf.mxu0
      %402 = vmatprep.mubr.bf16.mxu0 0
      %403 = vmatmul.mubr.bf16.gmra.mxu0 %v271
      %v404 = vpop.f32.mrf.mxu0
      %v405 = vadd.f32 0.0, %v404
      %v406 = vpop.f32.mrf.mxu0
      %v407 = vpop.f32.mrf.mxu0
      %v408 = vadd.f32 0.0, %v407
      %v409 = vpop.f32.mrf.mxu0
      %410 = vmatprep.mubr.bf16.mxu0 0
      %411 = vmatmul.mubr.bf16.gmra.mxu0 %v272
      %v412 = vpop.f32.mrf.mxu0
      %v413 = vadd.f32 0.0, %v412
      %v414 = vpop.f32.mrf.mxu0
      %v415 = vpop.f32.mrf.mxu0
      %v416 = vadd.f32 0.0, %v415
      %v417 = vpop.f32.mrf.mxu0
      %418 = vmatprep.mubr.bf16.mxu0 0
      %419 = vmatmul.mubr.bf16.gmra.mxu0 %v273
      %v420 = vpop.f32.mrf.mxu0
      %v421 = vadd.f32 0.0, %v420
      %v422 = vpop.f32.mrf.mxu0
      %v423 = vpop.f32.mrf.mxu0
      %v424 = vadd.f32 0.0, %v423
      %v425 = vpop.f32.mrf.mxu0
      %426 = vdwg.mxu0
      %v427 = vld [vmem:[%s2] sm:$0x1]
      %v429 = vlaneseq
      %v430 = vshrl.u32 %v429, 7
      %v431 = vsub.s32 0, %v430
      %v432 = vrot.slane %v427, %v431
      %v434 = vmul.f32 %v365, %v432
      %v435 = vmul.f32 %v368, %v432
      %v436 = vmul.f32 %v373, %v432
      %v437 = vmul.f32 %v376, %v432
      %v438 = vmul.f32 %v381, %v432
      %v439 = vmul.f32 %v384, %v432
      %v440 = vmul.f32 %v389, %v432
      %v441 = vmul.f32 %v392, %v432
      %v442 = vmul.f32 %v397, %v432
      %v443 = vmul.f32 %v400, %v432
      %v444 = vmul.f32 %v405, %v432
      %v445 = vmul.f32 %v408, %v432
      %v446 = vmul.f32 %v413, %v432
      %v447 = vmul.f32 %v416, %v432
      %v448 = vmul.f32 %v421, %v432
      %v449 = vmul.f32 %v424, %v432
      %v450 = vld [vmem:[%s3] sm:$0x1]
      %v452 = vlaneseq
      %v453 = vshrl.u32 %v452, 7
      %v454 = vsub.s32 0, %v453
      %v455 = vrot.slane %v450, %v454
      %v457 = vadd.f32 %v434, %v455
      %v458 = vadd.f32 %v435, %v455
      %v459 = vadd.f32 %v436, %v455
      %v460 = vadd.f32 %v437, %v455
      %v461 = vadd.f32 %v438, %v455
      %v462 = vadd.f32 %v439, %v455
      %v463 = vadd.f32 %v440, %v455
      %v464 = vadd.f32 %v441, %v455
      %v465 = vadd.f32 %v442, %v455
      %v466 = vadd.f32 %v443, %v455
      %v467 = vadd.f32 %v444, %v455
      %v468 = vadd.f32 %v445, %v455
      %v469 = vadd.f32 %v446, %v455
      %v470 = vadd.f32 %v447, %v455
      %v471 = vadd.f32 %v448, %v455
      %v472 = vadd.f32 %v449, %v455
      %v473 = vunpack.c.l.bf16 %v202
      %v474 = vunpack.c.l.bf16 %v203
      %v475 = vunpack.c.l.bf16 %v204
      %v476 = vunpack.c.l.bf16 %v205
      %v477 = vunpack.c.l.bf16 %v206
      %v478 = vunpack.c.l.bf16 %v207
      %v479 = vunpack.c.l.bf16 %v208
      %v480 = vunpack.c.l.bf16 %v209
      %v481 = vunpack.c.l.bf16 %v210
      %v482 = vunpack.c.l.bf16 %v211
      %v483 = vunpack.c.l.bf16 %v212
      %v484 = vunpack.c.l.bf16 %v213
      %v485 = vunpack.c.l.bf16 %v214
      %v486 = vunpack.c.l.bf16 %v215
      %v487 = vunpack.c.l.bf16 %v216
      %v488 = vunpack.c.l.bf16 %v217
      %v489 = vlaneseq
      %v490 = vand.u32 %v489, 127
      %vm491 = vcmp.lt.s32.totalorder %v490, 4
      %v492 = vsel %vm491, %v473, 0.0
      %v493 = vsel %vm491, %v474, 0.0
      %v494 = vsel %vm491, %v475, 0.0
      %v495 = vsel %vm491, %v476, 0.0
      %v496 = vsel %vm491, %v477, 0.0
      %v497 = vsel %vm491, %v478, 0.0
      %v498 = vsel %vm491, %v479, 0.0
      %v499 = vsel %vm491, %v480, 0.0
      %v500 = vsel %vm491, %v481, 0.0
      %v501 = vsel %vm491, %v482, 0.0
      %v502 = vsel %vm491, %v483, 0.0
      %v503 = vsel %vm491, %v484, 0.0
      %v504 = vsel %vm491, %v485, 0.0
      %v505 = vsel %vm491, %v486, 0.0
      %v506 = vsel %vm491, %v487, 0.0
      %v507 = vsel %vm491, %v488, 0.0
      %v508 = vadd.f32 %v457, %v492
      %v509 = vadd.f32 %v458, %v493
      %v510 = vadd.f32 %v459, %v494
      %v511 = vadd.f32 %v460, %v495
      %v512 = vadd.f32 %v461, %v496
      %v513 = vadd.f32 %v462, %v497
      %v514 = vadd.f32 %v463, %v498
      %v515 = vadd.f32 %v464, %v499
      %v516 = vadd.f32 %v465, %v500
      %v517 = vadd.f32 %v466, %v501
      %v518 = vadd.f32 %v467, %v502
      %v519 = vadd.f32 %v468, %v503
      %v520 = vadd.f32 %v469, %v504
      %v521 = vadd.f32 %v470, %v505
      %v522 = vadd.f32 %v471, %v506
      %v523 = vadd.f32 %v472, %v507
      %vm524 = vcmp.ge.f32.partialorder %v508, 0.0
      %vm525 = vcmp.ge.f32.partialorder %v509, 0.0
      %vm526 = vcmp.ge.f32.partialorder %v510, 0.0
      %vm527 = vcmp.ge.f32.partialorder %v511, 0.0
      %vm528 = vcmp.ge.f32.partialorder %v512, 0.0
      %vm529 = vcmp.ge.f32.partialorder %v513, 0.0
      %vm530 = vcmp.ge.f32.partialorder %v514, 0.0
      %vm531 = vcmp.ge.f32.partialorder %v515, 0.0
      %vm532 = vcmp.ge.f32.partialorder %v516, 0.0
      %vm533 = vcmp.ge.f32.partialorder %v517, 0.0
      %vm534 = vcmp.ge.f32.partialorder %v518, 0.0
      %vm535 = vcmp.ge.f32.partialorder %v519, 0.0
      %vm536 = vcmp.ge.f32.partialorder %v520, 0.0
      %vm537 = vcmp.ge.f32.partialorder %v521, 0.0
      %vm538 = vcmp.ge.f32.partialorder %v522, 0.0
      %vm539 = vcmp.ge.f32.partialorder %v523, 0.0
      %v540 = vmul.f32 %v508, 0.01
      %v541 = vmul.f32 %v509, 0.01
      %v542 = vmul.f32 %v510, 0.01
      %v543 = vmul.f32 %v511, 0.01
      %v544 = vmul.f32 %v512, 0.01
      %v545 = vmul.f32 %v513, 0.01
      %v546 = vmul.f32 %v514, 0.01
      %v547 = vmul.f32 %v515, 0.01
      %v548 = vmul.f32 %v516, 0.01
      %v549 = vmul.f32 %v517, 0.01
      %v550 = vmul.f32 %v518, 0.01
      %v551 = vmul.f32 %v519, 0.01
      %v552 = vmul.f32 %v520, 0.01
      %v553 = vmul.f32 %v521, 0.01
      %v554 = vmul.f32 %v522, 0.01
      %v555 = vmul.f32 %v523, 0.01
      %v556 = vsel %vm524, %v508, %v540
      %v557 = vsel %vm525, %v509, %v541
      %v558 = vsel %vm526, %v510, %v542
      %v559 = vsel %vm527, %v511, %v543
      %v560 = vsel %vm528, %v512, %v544
      %v561 = vsel %vm529, %v513, %v545
      %v562 = vsel %vm530, %v514, %v546
      %v563 = vsel %vm531, %v515, %v547
      %v564 = vsel %vm532, %v516, %v548
      %v565 = vsel %vm533, %v517, %v549
      %v566 = vsel %vm534, %v518, %v550
      %v567 = vsel %vm535, %v519, %v551
      %v568 = vsel %vm536, %v520, %v552
      %v569 = vsel %vm537, %v521, %v553
      %v570 = vsel %vm538, %v522, %v554
      %v571 = vsel %vm539, %v523, %v555
      %572 = vst [vmem:[%s199] sm:$0xff] %v556
      %573 = vst [vmem:[%s199 + $0x8] sm:$0xff] %v557
      %574 = vst [vmem:[%s199 + $0x10] sm:$0xff] %v558
      %575 = vst [vmem:[%s199 + $0x18] sm:$0xff] %v559
      %576 = vst [vmem:[%s199 + $0x20] sm:$0xff] %v560
      %577 = vst [vmem:[%s199 + $0x28] sm:$0xff] %v561
      %578 = vst [vmem:[%s199 + $0x30] sm:$0xff] %v562
      %579 = vst [vmem:[%s199 + $0x38] sm:$0xff] %v563
      %580 = vst [vmem:[%s199 + $0x40] sm:$0xff] %v564
      %581 = vst [vmem:[%s199 + $0x48] sm:$0xff] %v565
      %582 = vst [vmem:[%s199 + $0x50] sm:$0xff] %v566
      %583 = vst [vmem:[%s199 + $0x58] sm:$0xff] %v567
      %584 = vst [vmem:[%s199 + $0x60] sm:$0xff] %v568
      %585 = vst [vmem:[%s199 + $0x68] sm:$0xff] %v569
      %586 = vst [vmem:[%s199 + $0x70] sm:$0xff] %v570
      %587 = vst [vmem:[%s199 + $0x78] sm:$0xff] %v571
      %s588 = smul.u32 16, %s15
      %p589 = scmp.lt.s32.totalorder %s588, 63
      %s590 = scalar_select %p589, %s588, 63
      %s591 = smul.addr %s590, 8
      %s592 = scalar_lea.vmem %s4, %s591
      // Predicated region
      $region37: #{cnn_block_forward.3} parent=35 // pred_check
        %p593 = pneg %p122
      $region38: #{cnn_block_forward.3} parent=35 // pred_check_branch
        %595 = sbr.rel (%p593) target = $region40
      $region39: #{cnn_block_forward.3} parent=35 // pred_region
        %s596 = smul.u32 16, %s15
      $region40: #{cnn_block_forward.3} parent=35 // pred_fallthru
        _
    $region36: #{cnn_block_forward.3} parent=5 // pred_fallthru
      _
    %p597 = scmp.le.s32.totalorder 2, %s10
    // Predicated region
    $region41: #{cnn_block_forward.3} parent=5 // pred_check
      %p598 = pneg %p597
    $region42: #{cnn_block_forward.3} parent=5 // pred_check_branch
      %600 = sbr.rel (%p598) target = $region44
    $region43: #{cnn_block_forward.3} parent=5 // pred_region
      %s601 = ssub.s32 %s10, 2
      // Predicated region
      $region45: #{cnn_block_forward.3} parent=43 // pred_check
        %p602 = pneg %p128
      $region46: #{cnn_block_forward.3} parent=43 // pred_check_branch
        %604 = sbr.rel (%p602) target = $region48
      $region47: #{cnn_block_forward.3} parent=43 // pred_region
        %s605 = smul.u32 16, %s16
        %p606 = scmp.lt.s32.totalorder %s605, 63
        %s607 = scalar_select %p606, %s605, 63
        %s608 = smul.addr %s607, 8
        %s609 = scalar_lea.vmem %s4, %s608
      $region48: #{cnn_block_forward.3} parent=43 // pred_fallthru
        _
    $region44: #{cnn_block_forward.3} parent=5 // pred_fallthru
      _
  $region6: #{cnn_block_forward.3} parent=0 // loop_footer
    %s14 = sadd.s32 1, %s10
  $region7: #{cnn_block_forward.3} parent=0 // loop_footer_branch
    %9 = sbr.rel target = $region3
  $region8: #{cnn_block_forward.3} parent=0 // loop_exit
    _

</llo_original>
